<compile_context>
chip_gen: v6e
topology: v6e:2x2x1
jax: 0.10.0
libtpu: 0.0.40
codegen_flags: <defaults>
</compile_context>

<pallas_src>
import functools

import jax
import jax.numpy as jnp
from jax.experimental import pallas as pl
from jax.experimental.pallas import tpu as pltpu


_LANE = 128
_SUBLANE = 8
_TARGET_STEP_BYTES = 4 * 1024 * 1024   # ~4 MiB of x per grid step (mem-bound sweet spot)
_VMEM_FRACTION = 0.72                  # fraction of physical VMEM we budget for


def _round_up(n, m):
    return ((n + m - 1) // m) * m


@functools.lru_cache(maxsize=1)
def _vmem_budget_bytes():
    """Generation-aware VMEM budget (per TensorCore)."""
    cap = 64 * 1024 * 1024             # conservative fallback = v7x per-TC VMEM
    try:
        info = pltpu.get_tpu_info()
        cap_attr = getattr(info, "vmem_capacity_bytes", None)
        if cap_attr:
            cap = int(cap_attr)
    except Exception:
        pass
    return int(_VMEM_FRACTION * cap)


@functools.lru_cache(maxsize=1)
def _num_tensorcores():
    """TensorCores per chip (2 on v7x megacore, 1 on v5e/v6e).  Fallback: 1."""
    try:
        info = pltpu.get_tpu_info()
        for attr in ("num_cores", "tensorcores_per_chip", "num_tensorcores", "core_count"):
            v = getattr(info, attr, None)
            if v and int(v) > 0:
                return int(v)
    except Exception:
        pass
    try:
        dev = jax.devices()[0]
        v = getattr(dev, "num_cores", None)
        if v and int(v) > 0:
            return int(v)
        kind = str(getattr(dev, "device_kind", "")).lower()
        if "v7" in kind or "7x" in kind:
            return 2
    except Exception:
        pass
    return 1


def _padded_2d_bytes(rows, cols, itemsize):
    """VMEM footprint of a 2-D buffer after (8, 128) tile padding."""
    return _round_up(max(rows, 1), _SUBLANE) * _round_up(max(cols, 1), _LANE) * itemsize


def _est_vmem_bytes(tile, D, x_itemsize):
    """Lane-padding-aware VMEM footprint of one grid step."""
    x_bufs = 2 * _padded_2d_bytes(tile, D, x_itemsize)          # double-buffered x tile
    out_bufs = 2 * _padded_2d_bytes(2, tile, 4)                 # double-buffered (2, tile) out
    w_shapes = [(D, 64), (64, 32), (32, 16), (2, 16)]
    b_shapes = [(1, 64), (1, 32), (1, 16), (2, 1)]
    param_bufs = 2 * sum(_padded_2d_bytes(r, c, 4) for r, c in w_shapes + b_shapes)
    act = 3 * _padded_2d_bytes(tile, 64, 4)                     # h1/h2/h3 all pad to 128 lanes
    act += _padded_2d_bytes(2, tile, 4)                         # transposed logits before store
    return x_bufs + out_bufs + param_bufs + act


def _choose_tile(B, D, x_itemsize):
    """Batch tile sized in bytes per grid step, capped by the per-generation VMEM budget."""
    budget = _vmem_budget_bytes()
    row_bytes = max(D * x_itemsize, 1)
    total_bytes = B * row_bytes

    # On megacore chips, force >= 2 grid steps whenever each step still moves >= ~1 MiB
    # so the "parallel" batch axis actually uses both TensorCores.
    min_steps = 2 if (_num_tensorcores() >= 2 and total_bytes >= 2 * (1 << 20)) else 1

    # Single-step fast path: whole batch as one full-extent block (legal for any B).
    if (min_steps == 1 and total_bytes <= _TARGET_STEP_BYTES
            and _est_vmem_bytes(B, D, x_itemsize) <= budget):
        return B

    # Multi-step path: tile must be a multiple of 128 so the (2, tile) transposed
    # output block is lane-dense and the x block's sublane dim is aligned.
    tile = _round_up(max(_TARGET_STEP_BYTES // row_bytes, 1), _LANE)
    tile = min(tile, _round_up(pl.cdiv(B, min_steps), _LANE))
    tile = max(tile, _LANE)
    while tile > _LANE and _est_vmem_bytes(tile, D, x_itemsize) > budget:
        tile -= _LANE
    return tile


def _mlp_kernel(x_ref, w1_ref, b1_ref, w2_ref, b2_ref, w3_ref, b3_ref,
                w4t_ref, b4t_ref, o_ref):
    """Whole 4-layer MLP for one batch tile; logits written transposed (2, tile)."""
    h = jnp.dot(x_ref[...], w1_ref[...],
                preferred_element_type=jnp.float32) + b1_ref[...]
    h = jnp.maximum(h, 0.0)

    h = jnp.dot(h, w2_ref[...], preferred_element_type=jnp.float32) + b2_ref[...]
    h = jnp.maximum(h, 0.0)

    h = jnp.dot(h, w3_ref[...], preferred_element_type=jnp.float32) + b3_ref[...]
    h = jnp.maximum(h, 0.0)

    # Final layer computed directly in transposed (2, tile) form so the store is
    # lane-dense (full-width vst instead of a 2/128-lane masked vst).
    o_t = jax.lax.dot_general(
        w4t_ref[...], h,
        dimension_numbers=(((1,), (1,)), ((), ())),
        preferred_element_type=jnp.float32) + b4t_ref[...]

    o_ref[...] = o_t.astype(o_ref.dtype)


@functools.partial(jax.jit, static_argnames=("tile", "vmem_limit"))
def _classifier_forward_impl(x, w1, b1, w2, b2, w3, b3, w4, b4, *, tile, vmem_limit):
    B, D = x.shape
    f32 = jnp.float32

    # Only the big (x-touching) matmul's weights match x's dtype; everything else
    # stays f32 with f32 accumulation.  Weights are ~KBs, so these casts are free.
    w1 = w1.astype(x.dtype)
    w2 = w2.astype(f32)
    w3 = w3.astype(f32)
    b1 = b1.reshape(1, 64).astype(f32)
    b2 = b2.reshape(1, 32).astype(f32)
    b3 = b3.reshape(1, 16).astype(f32)
    w4t = w4.astype(f32).T             # (2, 16): pre-transposed final layer
    b4t = b4.reshape(2, 1).astype(f32)

    params = (w1, b1, w2, b2, w3, b3, w4t, b4t)
    # Tiny params with constant index maps stay VMEM-resident across grid steps.
    param_specs = [pl.BlockSpec(p.shape, lambda i: (0, 0)) for p in params]

    grid = pl.cdiv(B, tile)            # edge block (if any) is masked by Pallas
    out_t = pl.pallas_call(
        _mlp_kernel,
        out_shape=jax.ShapeDtypeStruct((2, B), jnp.float32),
        grid=(grid,),
        in_specs=[pl.BlockSpec((tile, D), lambda i: (i, 0))] + param_specs,
        out_specs=pl.BlockSpec((2, tile), lambda i: (0, i)),
        compiler_params=pltpu.CompilerParams(
            dimension_semantics=("parallel",),
            vmem_limit_bytes=vmem_limit),
        # TODO(synk): if an xprof trace at large D shows the x DMA exposed at step
        # boundaries, bump in_specs[0] to pipeline_mode=pl.Buffered(3).
    )(x, *params)

    # Logits-major (2, B) -> (B, 2) to match the PyTorch module's output layout.
    return out_t.T


def classifier_forward(x, params, tile=None):
    """Forward pass of the Classifier MLP via one fused Pallas kernel.

    x: (B, D) float32 (bit-matching path) or bfloat16 (fast path: caller supplies
       bf16 activations, halving the dominant HBM read; accumulation stays f32).
    params: [(w1, b1), (w2, b2), (w3, b3), (w4, b4)], w_i (in, out), b_i (1, out).
    tile: optional batch-tile override (multiple of 128 when it splits the batch).
    """
    (w1, b1), (w2, b2), (w3, b3), (w4, b4) = params
    B, D = x.shape

    # Never cast an f32 x here (that would add an extra HBM pass to a mem-bound
    # kernel); only normalize exotic dtypes to f32.
    if x.dtype not in (jnp.float32, jnp.bfloat16):
        x = x.astype(jnp.float32)

    if tile is None:
        tile = _choose_tile(B, D, jnp.dtype(x.dtype).itemsize)
    tile = int(min(tile, B))
    if tile < B and tile % _LANE != 0:
        raise ValueError(
            f"batch tile {tile} must be a multiple of {_LANE} when it splits the batch")

    return _classifier_forward_impl(
        x, w1, b1, w2, b2, w3, b3, w4, b4,
        tile=tile, vmem_limit=_vmem_budget_bytes())


def init_classifier_params(input_dim, key=None):
    """Deterministic synthetic parameters (shapes from Classifier.__init__)."""
    if key is None:
        key = jax.random.PRNGKey(0)
    dims = [input_dim, 64, 32, 16, 2]
    params = []
    for i in range(4):
        key, kw, kb = jax.random.split(key, 3)
        bound = 1.0 / jnp.sqrt(jnp.float32(dims[i]))
        w = jax.random.uniform(kw, (dims[i], dims[i + 1]),
                               minval=-bound, maxval=bound, dtype=jnp.float32)
        b = jax.random.uniform(kb, (1, dims[i + 1]),
                               minval=-bound, maxval=bound, dtype=jnp.float32)
        params.append((w, b))
    return params


def classifier_forward_ref(x, params):
    """Pure-JAX reference for correctness checking."""
    h = x.astype(jnp.float32)
    for i, (w, b) in enumerate(params):
        h = h @ w.astype(jnp.float32) + b.astype(jnp.float32)
        if i < 3:
            h = jnp.maximum(h, 0.0)
    return h


if __name__ == "__main__":
    key = jax.random.PRNGKey(0)
    k_x, k_p, k_x2 = jax.random.split(key, 3)

    input_dim = 32
    params = init_classifier_params(input_dim, key=k_p)

    # Small case consistent with the module: batch=2, input_dim=32 (single-step path).
    x = jax.random.normal(k_x, (2, input_dim), dtype=jnp.float32)
    out = jax.block_until_ready(classifier_forward(x, params))
    ref = classifier_forward_ref(x, params)
    assert out.shape == (2, 2), out.shape
    assert jnp.allclose(out, ref, atol=1e-5, rtol=1e-5), (out, ref)

    # Non-tile-aligned batch; force the multi-step path to exercise edge masking.
    x2 = jax.random.normal(k_x2, (600, input_dim), dtype=jnp.float32)
    ref2 = classifier_forward_ref(x2, params)
    out2 = jax.block_until_ready(classifier_forward(x2, params, tile=256))
    assert out2.shape == (600, 2), out2.shape
    assert jnp.allclose(out2, ref2, atol=1e-5, rtol=1e-5)

    # Auto-tiled path on the same data (byte-targeted tile / single step on 1-TC chips).
    out2b = jax.block_until_ready(classifier_forward(x2, params))
    assert out2b.shape == (600, 2), out2b.shape
    assert jnp.allclose(out2b, ref2, atol=1e-5, rtol=1e-5)

    # bf16 fast path: caller supplies bf16 activations (halves the dominant x read);
    # f32 accumulation kept inside the kernel.
    x2_bf16 = x2.astype(jnp.bfloat16)
    out_bf16 = jax.block_until_ready(classifier_forward(x2_bf16, params))
    assert out_bf16.shape == (600, 2), out_bf16.shape
    assert jnp.allclose(out_bf16, ref2, atol=1e-1, rtol=1e-1)

    print("KERNEL_OK")
</pallas_src>

<mosaic_0001>
module attributes {stable_mosaic.version = 11 : i64} {
  func.func @_mlp_kernel(%arg0: i32, %arg1: memref<2x32xf32, #tpu.memory_space<vmem>>, %arg2: memref<32x64xf32, #tpu.memory_space<vmem>>, %arg3: memref<1x64xf32, #tpu.memory_space<vmem>>, %arg4: memref<64x32xf32, #tpu.memory_space<vmem>>, %arg5: memref<1x32xf32, #tpu.memory_space<vmem>>, %arg6: memref<32x16xf32, #tpu.memory_space<vmem>>, %arg7: memref<1x16xf32, #tpu.memory_space<vmem>>, %arg8: memref<2x16xf32, #tpu.memory_space<vmem>>, %arg9: memref<2x1xf32, #tpu.memory_space<vmem>>, %arg10: memref<2x2xf32, #tpu.memory_space<vmem>>) attributes {dimension_semantics = [#tpu.dimension_semantics<parallel>], iteration_bounds = array<i64: 1>, scalar_prefetch = 0 : i64, scratch_operands = 0 : i64, tpu.core_type = #tpu.core_type<tc>, window_params = [{transform_indices = @transform_0, window_bounds = array<i64: 2, 32>}, {pipeline_mode = #tpu.pipeline_mode<synchronous>, transform_indices = @transform_1, window_bounds = array<i64: 32, 64>}, {pipeline_mode = #tpu.pipeline_mode<synchronous>, transform_indices = @transform_2, window_bounds = array<i64: 1, 64>}, {pipeline_mode = #tpu.pipeline_mode<synchronous>, transform_indices = @transform_3, window_bounds = array<i64: 64, 32>}, {pipeline_mode = #tpu.pipeline_mode<synchronous>, transform_indices = @transform_4, window_bounds = array<i64: 1, 32>}, {pipeline_mode = #tpu.pipeline_mode<synchronous>, transform_indices = @transform_5, window_bounds = array<i64: 32, 16>}, {pipeline_mode = #tpu.pipeline_mode<synchronous>, transform_indices = @transform_6, window_bounds = array<i64: 1, 16>}, {pipeline_mode = #tpu.pipeline_mode<synchronous>, transform_indices = @transform_7, window_bounds = array<i64: 2, 16>}, {pipeline_mode = #tpu.pipeline_mode<synchronous>, transform_indices = @transform_8, window_bounds = array<i64: 2, 1>}, {transform_indices = @transform_9, window_bounds = array<i64: 2, 2>}]} {
    %c0 = arith.constant 0 : index
    %c0_0 = arith.constant 0 : index
    %0 = vector.load %arg1[%c0, %c0_0] : memref<2x32xf32, #tpu.memory_space<vmem>>, vector<2x32xf32>
    %c0_1 = arith.constant 0 : index
    %c0_2 = arith.constant 0 : index
    %1 = vector.load %arg2[%c0_1, %c0_2] : memref<32x64xf32, #tpu.memory_space<vmem>>, vector<32x64xf32>
    %cst = arith.constant dense<0.000000e+00> : vector<2x64xf32>
    %2 = tpu.matmul %0, %1, %cst {dimension_numbers = #tpu.dot_dimension_numbers<[1], [0], [0], [1], [0, 0, 1, 1], [], []>} : vector<2x32xf32>, vector<32x64xf32>, vector<2x64xf32> -> vector<2x64xf32>
    %c0_3 = arith.constant 0 : index
    %c0_4 = arith.constant 0 : index
    %3 = vector.load %arg3[%c0_3, %c0_4] : memref<1x64xf32, #tpu.memory_space<vmem>>, vector<1x64xf32>
    %4 = vector.broadcast %3 : vector<1x64xf32> to vector<2x64xf32>
    %5 = arith.addf %2, %4 : vector<2x64xf32>
    %cst_5 = arith.constant 0.000000e+00 : f32
    %6 = vector.broadcast %cst_5 : f32 to vector<2x64xf32>
    %7 = arith.maximumf %5, %6 : vector<2x64xf32>
    %c0_6 = arith.constant 0 : index
    %c0_7 = arith.constant 0 : index
    %8 = vector.load %arg4[%c0_6, %c0_7] : memref<64x32xf32, #tpu.memory_space<vmem>>, vector<64x32xf32>
    %cst_8 = arith.constant dense<0.000000e+00> : vector<2x32xf32>
    %9 = tpu.matmul %7, %8, %cst_8 {dimension_numbers = #tpu.dot_dimension_numbers<[1], [0], [0], [1], [0, 0, 1, 1], [], []>} : vector<2x64xf32>, vector<64x32xf32>, vector<2x32xf32> -> vector<2x32xf32>
    %c0_9 = arith.constant 0 : index
    %c0_10 = arith.constant 0 : index
    %10 = vector.load %arg5[%c0_9, %c0_10] : memref<1x32xf32, #tpu.memory_space<vmem>>, vector<1x32xf32>
    %11 = vector.broadcast %10 : vector<1x32xf32> to vector<2x32xf32>
    %12 = arith.addf %9, %11 : vector<2x32xf32>
    %cst_11 = arith.constant 0.000000e+00 : f32
    %13 = vector.broadcast %cst_11 : f32 to vector<2x32xf32>
    %14 = arith.maximumf %12, %13 : vector<2x32xf32>
    %c0_12 = arith.constant 0 : index
    %c0_13 = arith.constant 0 : index
    %15 = vector.load %arg6[%c0_12, %c0_13] : memref<32x16xf32, #tpu.memory_space<vmem>>, vector<32x16xf32>
    %cst_14 = arith.constant dense<0.000000e+00> : vector<2x16xf32>
    %16 = tpu.matmul %14, %15, %cst_14 {dimension_numbers = #tpu.dot_dimension_numbers<[1], [0], [0], [1], [0, 0, 1, 1], [], []>} : vector<2x32xf32>, vector<32x16xf32>, vector<2x16xf32> -> vector<2x16xf32>
    %c0_15 = arith.constant 0 : index
    %c0_16 = arith.constant 0 : index
    %17 = vector.load %arg7[%c0_15, %c0_16] : memref<1x16xf32, #tpu.memory_space<vmem>>, vector<1x16xf32>
    %18 = vector.broadcast %17 : vector<1x16xf32> to vector<2x16xf32>
    %19 = arith.addf %16, %18 : vector<2x16xf32>
    %cst_17 = arith.constant 0.000000e+00 : f32
    %20 = vector.broadcast %cst_17 : f32 to vector<2x16xf32>
    %21 = arith.maximumf %19, %20 : vector<2x16xf32>
    %c0_18 = arith.constant 0 : index
    %c0_19 = arith.constant 0 : index
    %22 = vector.load %arg8[%c0_18, %c0_19] : memref<2x16xf32, #tpu.memory_space<vmem>>, vector<2x16xf32>
    %cst_20 = arith.constant dense<0.000000e+00> : vector<2x2xf32>
    %23 = tpu.matmul %22, %21, %cst_20 {dimension_numbers = #tpu.dot_dimension_numbers<[1], [1], [0], [0], [0, 0, 1, 0], [], []>} : vector<2x16xf32>, vector<2x16xf32>, vector<2x2xf32> -> vector<2x2xf32>
    %c0_21 = arith.constant 0 : index
    %c0_22 = arith.constant 0 : index
    %24 = vector.load %arg9[%c0_21, %c0_22] : memref<2x1xf32, #tpu.memory_space<vmem>>, vector<2x1xf32>
    %25 = vector.broadcast %24 : vector<2x1xf32> to vector<2x2xf32>
    %26 = arith.addf %23, %25 : vector<2x2xf32>
    %c0_23 = arith.constant 0 : index
    %c0_24 = arith.constant 0 : index
    %27 = vector.load %arg10[%c0_23, %c0_24] : memref<2x2xf32, #tpu.memory_space<vmem>>, vector<2x2xf32>
    tpu.vector_store %arg10[%c0_23, %c0_24], %26 {strides = array<i32>} : memref<2x2xf32, #tpu.memory_space<vmem>>, vector<2x2xf32>,
    return
  }
  func.func @transform_0(%arg0: i32) -> (i32, i32) {
    %c0_i32 = arith.constant 0 : i32
    %c0_i32_0 = arith.constant 0 : i32
    return %arg0, %c0_i32 : i32, i32
  }
  func.func @transform_1(%arg0: i32) -> (i32, i32) {
    %c0_i32 = arith.constant 0 : i32
    %c0_i32_0 = arith.constant 0 : i32
    %c0_i32_1 = arith.constant 0 : i32
    return %c0_i32, %c0_i32_0 : i32, i32
  }
  func.func @transform_2(%arg0: i32) -> (i32, i32) {
    %c0_i32 = arith.constant 0 : i32
    %c0_i32_0 = arith.constant 0 : i32
    %c0_i32_1 = arith.constant 0 : i32
    return %c0_i32, %c0_i32_0 : i32, i32
  }
  func.func @transform_3(%arg0: i32) -> (i32, i32) {
    %c0_i32 = arith.constant 0 : i32
    %c0_i32_0 = arith.constant 0 : i32
    %c0_i32_1 = arith.constant 0 : i32
    return %c0_i32, %c0_i32_0 : i32, i32
  }
  func.func @transform_4(%arg0: i32) -> (i32, i32) {
    %c0_i32 = arith.constant 0 : i32
    %c0_i32_0 = arith.constant 0 : i32
    %c0_i32_1 = arith.constant 0 : i32
    return %c0_i32, %c0_i32_0 : i32, i32
  }
  func.func @transform_5(%arg0: i32) -> (i32, i32) {
    %c0_i32 = arith.constant 0 : i32
    %c0_i32_0 = arith.constant 0 : i32
    %c0_i32_1 = arith.constant 0 : i32
    return %c0_i32, %c0_i32_0 : i32, i32
  }
  func.func @transform_6(%arg0: i32) -> (i32, i32) {
    %c0_i32 = arith.constant 0 : i32
    %c0_i32_0 = arith.constant 0 : i32
    %c0_i32_1 = arith.constant 0 : i32
    return %c0_i32, %c0_i32_0 : i32, i32
  }
  func.func @transform_7(%arg0: i32) -> (i32, i32) {
    %c0_i32 = arith.constant 0 : i32
    %c0_i32_0 = arith.constant 0 : i32
    %c0_i32_1 = arith.constant 0 : i32
    return %c0_i32, %c0_i32_0 : i32, i32
  }
  func.func @transform_8(%arg0: i32) -> (i32, i32) {
    %c0_i32 = arith.constant 0 : i32
    %c0_i32_0 = arith.constant 0 : i32
    %c0_i32_1 = arith.constant 0 : i32
    return %c0_i32, %c0_i32_0 : i32, i32
  }
  func.func @transform_9(%arg0: i32) -> (i32, i32) {
    %c0_i32 = arith.constant 0 : i32
    %c0_i32_0 = arith.constant 0 : i32
    return %c0_i32, %arg0 : i32, i32
  }
}

</mosaic_0001>

<llo_original>
// kernel: _classifier_forward_impl.1
$region0: #{_classifier_forward_impl.1}
  #allocation0 [shape = 'u32[]', space=smem, size = 0x4, offset = 0x4, fixed_abs, tag = 'smem constant byte address 0x4 - core index']
  #allocation1 [shape = 'u32[144,128]{1,0:T(1,128)}', space=vmem, size = 0x12000, scoped, tag = 'internal scratch']
  %s0 = inlined_call_operand.vmem [shape: f32[2,32], index: 0, kind: input, shape index: {}]
  %s1 = inlined_call_operand.vmem [shape: f32[32,64], index: 1, kind: input, shape index: {}]
  %s2 = inlined_call_operand.vmem [shape: f32[1,64], index: 2, kind: input, shape index: {}]
  %s3 = inlined_call_operand.vmem [shape: f32[64,32], index: 3, kind: input, shape index: {}]
  %s4 = inlined_call_operand.vmem [shape: f32[1,32], index: 4, kind: input, shape index: {}]
  %s5 = inlined_call_operand.vmem [shape: f32[32,16], index: 5, kind: input, shape index: {}]
  %s6 = inlined_call_operand.vmem [shape: f32[1,16], index: 6, kind: input, shape index: {}]
  %s7 = inlined_call_operand.vmem [shape: f32[2,16], index: 7, kind: input, shape index: {}]
  %s8 = inlined_call_operand.vmem [shape: f32[2,1], index: 8, kind: input, shape index: {}]
  %s9 = inlined_call_operand.vmem [shape: f32[2,2], index: 9, kind: output, shape index: {}]
  %s10 = sld [smem:[#allocation0]]
  $region46: #{_classifier_forward_impl.1} parent=0
    _
  %s12 = ssub.s32 1, %s10
  %s13 = scalar_select 0, %s12, %s10
  // Predicated region
  $region2: #{_classifier_forward_impl.1} parent=0 // pred_check
    _
  $region3: #{_classifier_forward_impl.1} parent=0 // pred_check_branch
    %15 = sbr.rel (0) target = $region5
  $region4: #{_classifier_forward_impl.1} parent=0 // pred_region
    _
  $region5: #{_classifier_forward_impl.1} parent=0 // pred_fallthru
    _
  // Predicated region
  $region6: #{_classifier_forward_impl.1} parent=0 // pred_check
    _
  $region7: #{_classifier_forward_impl.1} parent=0 // pred_check_branch
    %17 = sbr.rel (0) target = $region9
  $region8: #{_classifier_forward_impl.1} parent=0 // pred_region
    _
  $region9: #{_classifier_forward_impl.1} parent=0 // pred_fallthru
    _
  // Predicated region
  $region10: #{_classifier_forward_impl.1} parent=0 // pred_check
    _
  $region11: #{_classifier_forward_impl.1} parent=0 // pred_check_branch
    %19 = sbr.rel (0) target = $region13
  $region12: #{_classifier_forward_impl.1} parent=0 // pred_region
    _
  $region13: #{_classifier_forward_impl.1} parent=0 // pred_fallthru
    _
  // Predicated region
  $region14: #{_classifier_forward_impl.1} parent=0 // pred_check
    _
  $region15: #{_classifier_forward_impl.1} parent=0 // pred_check_branch
    %21 = sbr.rel (0) target = $region17
  $region16: #{_classifier_forward_impl.1} parent=0 // pred_region
    _
  $region17: #{_classifier_forward_impl.1} parent=0 // pred_fallthru
    _
  // Predicated region
  $region18: #{_classifier_forward_impl.1} parent=0 // pred_check
    _
  $region19: #{_classifier_forward_impl.1} parent=0 // pred_check_branch
    %23 = sbr.rel (0) target = $region21
  $region20: #{_classifier_forward_impl.1} parent=0 // pred_region
    _
  $region21: #{_classifier_forward_impl.1} parent=0 // pred_fallthru
    _
  // Predicated region
  $region22: #{_classifier_forward_impl.1} parent=0 // pred_check
    _
  $region23: #{_classifier_forward_impl.1} parent=0 // pred_check_branch
    %25 = sbr.rel (0) target = $region25
  $region24: #{_classifier_forward_impl.1} parent=0 // pred_region
    _
  $region25: #{_classifier_forward_impl.1} parent=0 // pred_fallthru
    _
  // Predicated region
  $region26: #{_classifier_forward_impl.1} parent=0 // pred_check
    _
  $region27: #{_classifier_forward_impl.1} parent=0 // pred_check_branch
    %27 = sbr.rel (0) target = $region29
  $region28: #{_classifier_forward_impl.1} parent=0 // pred_region
    _
  $region29: #{_classifier_forward_impl.1} parent=0 // pred_fallthru
    _
  // Predicated region
  $region30: #{_classifier_forward_impl.1} parent=0 // pred_check
    _
  $region31: #{_classifier_forward_impl.1} parent=0 // pred_check_branch
    %29 = sbr.rel (0) target = $region33
  $region32: #{_classifier_forward_impl.1} parent=0 // pred_region
    _
  $region33: #{_classifier_forward_impl.1} parent=0 // pred_fallthru
    _
  // Predicated region
  $region34: #{_classifier_forward_impl.1} parent=0 // pred_check
    _
  $region35: #{_classifier_forward_impl.1} parent=0 // pred_check_branch
    %31 = sbr.rel (0) target = $region37
  $region36: #{_classifier_forward_impl.1} parent=0 // pred_region
    _
  $region37: #{_classifier_forward_impl.1} parent=0 // pred_fallthru
    _
  %v32 = vld [vmem:[%s0] sm:$0x3]
  %v33 = vld [vmem:[%s1] sm:$0xff]
  %v34 = vld [vmem:[%s1 + $0x8] sm:$0xff]
  %v35 = vld [vmem:[%s1 + $0x10] sm:$0xff]
  %v36 = vld [vmem:[%s1 + $0x18] sm:$0xff]
  %v37 = vld [vmem:[%s2] sm:$0x1]
  %v39 = vlaneseq
  %v40 = vshrl.u32 %v39, 7
  %v41 = vsub.s32 0, %v40
  %v42 = vrot.slane %v37, %v41
  %vm44 = vcmask 261120
  %v46 = vsel %vm44, %v32, 0
  %48 = vmatprep.subr.mxu0 0.0
  %49 = vmatpush1.msra.mxu0 0.0
  %50 = vmatprep.subr.mxu0 0.0
  %51 = vmatpush1.msra.mxu0 0.0
  %52 = vmatprep.subr.mxu0 0.0
  %53 = vmatpush1.msra.mxu0 0.0
  %54 = vmatprep.subr.mxu0 0.0
  %55 = vmatpush1.msra.mxu0 0.0
  %56 = vmatprep.subr.mxu0 0.0
  %57 = vmatpush1.msra.mxu0 0.0
  %58 = vmatprep.subr.mxu0 0.0
  %59 = vmatpush1.msra.mxu0 0.0
  %60 = vmatprep.subr.mxu0 0.0
  %61 = vmatpush1.msra.mxu0 0.0
  %62 = vmatprep.subr.mxu0 0.0
  %63 = vmatpush1.msra.mxu0 0.0
  %64 = vmatprep.subr.mxu0 0.0
  %65 = vmatpush1.msra.mxu0 0.0
  %66 = vmatprep.subr.mxu0 0.0
  %67 = vmatpush1.msra.mxu0 0.0
  %68 = vmatprep.subr.mxu0 0.0
  %69 = vmatpush1.msra.mxu0 0.0
  %70 = vmatprep.subr.mxu0 0.0
  %71 = vmatpush1.msra.mxu0 0.0
  %72 = vmatprep.subr.mxu0 0.0
  %73 = vmatpush1.msra.mxu0 %v36
  %74 = vmatprep.subr.mxu0 0.0
  %75 = vmatpush1.msra.mxu0 %v35
  %76 = vmatprep.subr.mxu0 0.0
  %77 = vmatpush1.msra.mxu0 %v34
  %78 = vmatprep.subr.mxu0 0.0
  %79 = vmatpush1.msra.mxu0 %v33
  %80 = vmatprep.subr.mxu0 0.0
  %81 = vmatpush2.msra.mxu0 0.0
  %82 = vmatprep.subr.mxu0 0.0
  %83 = vmatpush2.msra.mxu0 0.0
  %84 = vmatprep.subr.mxu0 0.0
  %85 = vmatpush2.msra.mxu0 0.0
  %86 = vmatprep.subr.mxu0 0.0
  %87 = vmatpush2.msra.mxu0 0.0
  %88 = vmatprep.subr.mxu0 0.0
  %89 = vmatpush2.msra.mxu0 0.0
  %90 = vmatprep.subr.mxu0 0.0
  %91 = vmatpush2.msra.mxu0 0.0
  %92 = vmatprep.subr.mxu0 0.0
  %93 = vmatpush2.msra.mxu0 0.0
  %94 = vmatprep.subr.mxu0 0.0
  %95 = vmatpush2.msra.mxu0 0.0
  %96 = vmatprep.subr.mxu0 0.0
  %97 = vmatpush2.msra.mxu0 0.0
  %98 = vmatprep.subr.mxu0 0.0
  %99 = vmatpush2.msra.mxu0 0.0
  %100 = vmatprep.subr.mxu0 0.0
  %101 = vmatpush2.msra.mxu0 0.0
  %102 = vmatprep.subr.mxu0 0.0
  %103 = vmatpush2.msra.mxu0 0.0
  %104 = vmatprep.subr.mxu0 0.0
  %105 = vmatpush2.msra.mxu0 0.0
  %106 = vmatprep.subr.mxu0 0.0
  %107 = vmatpush2.msra.mxu0 0.0
  %108 = vmatprep.subr.mxu0 0.0
  %109 = vmatpush2.msra.mxu0 0.0
  %110 = vmatprep.subr.mxu0 0.0
  %111 = vmatpush2.msra.mxu0 0.0
  %112 = vmatprep.mubr.f32.mxu0 0.0
  %113 = vmatmul.mubr.f32.gmra.mxu0 %v46
  %v114 = vpop.f32.mrf.mxu0
  %v115 = vadd.f32 %v42, %v114
  %v116 = vpop.f32.mrf.mxu0
  %117 = vdwg.mxu0
  %v118 = vmax.f32 %v115, 0.0
  %v119 = vld [vmem:[%s3] sm:$0xff]
  %v120 = vld [vmem:[%s3 + $0x8] sm:$0xff]
  %v121 = vld [vmem:[%s3 + $0x10] sm:$0xff]
  %v122 = vld [vmem:[%s3 + $0x18] sm:$0xff]
  %v123 = vld [vmem:[%s3 + $0x20] sm:$0xff]
  %v124 = vld [vmem:[%s3 + $0x28] sm:$0xff]
  %v125 = vld [vmem:[%s3 + $0x30] sm:$0xff]
  %v126 = vld [vmem:[%s3 + $0x38] sm:$0xff]
  %v127 = vld [vmem:[%s4] sm:$0x1]
  %v129 = vlaneseq
  %v130 = vshrl.u32 %v129, 7
  %v131 = vsub.s32 0, %v130
  %v132 = vrot.slane %v127, %v131
  %vm134 = vcmask 523264
  %v136 = vsel %vm134, %v118, 0
  %138 = vmatprep.subr.mxu0 0.0
  %139 = vmatpush1.msra.mxu0 0.0
  %140 = vmatprep.subr.mxu0 0.0
  %141 = vmatpush1.msra.mxu0 0.0
  %142 = vmatprep.subr.mxu0 0.0
  %143 = vmatpush1.msra.mxu0 0.0
  %144 = vmatprep.subr.mxu0 0.0
  %145 = vmatpush1.msra.mxu0 0.0
  %146 = vmatprep.subr.mxu0 0.0
  %147 = vmatpush1.msra.mxu0 0.0
  %148 = vmatprep.subr.mxu0 0.0
  %149 = vmatpush1.msra.mxu0 0.0
  %150 = vmatprep.subr.mxu0 0.0
  %151 = vmatpush1.msra.mxu0 0.0
  %152 = vmatprep.subr.mxu0 0.0
  %153 = vmatpush1.msra.mxu0 0.0
  %154 = vmatprep.subr.mxu0 0.0
  %155 = vmatpush1.msra.mxu0 %v126
  %156 = vmatprep.subr.mxu0 0.0
  %157 = vmatpush1.msra.mxu0 %v125
  %158 = vmatprep.subr.mxu0 0.0
  %159 = vmatpush1.msra.mxu0 %v124
  %160 = vmatprep.subr.mxu0 0.0
  %161 = vmatpush1.msra.mxu0 %v123
  %162 = vmatprep.subr.mxu0 0.0
  %163 = vmatpush1.msra.mxu0 %v122
  %164 = vmatprep.subr.mxu0 0.0
  %165 = vmatpush1.msra.mxu0 %v121
  %166 = vmatprep.subr.mxu0 0.0
  %167 = vmatpush1.msra.mxu0 %v120
  %168 = vmatprep.subr.mxu0 0.0
  %169 = vmatpush1.msra.mxu0 %v119
  %170 = vmatprep.subr.mxu0 0.0
  %171 = vmatpush2.msra.mxu0 0.0
  %172 = vmatprep.subr.mxu0 0.0
  %173 = vmatpush2.msra.mxu0 0.0
  %174 = vmatprep.subr.mxu0 0.0
  %175 = vmatpush2.msra.mxu0 0.0
  %176 = vmatprep.subr.mxu0 0.0
  %177 = vmatpush2.msra.mxu0 0.0
  %178 = vmatprep.subr.mxu0 0.0
  %179 = vmatpush2.msra.mxu0 0.0
  %180 = vmatprep.subr.mxu0 0.0
  %181 = vmatpush2.msra.mxu0 0.0
  %182 = vmatprep.subr.mxu0 0.0
  %183 = vmatpush2.msra.mxu0 0.0
  %184 = vmatprep.subr.mxu0 0.0
  %185 = vmatpush2.msra.mxu0 0.0
  %186 = vmatprep.subr.mxu0 0.0
  %187 = vmatpush2.msra.mxu0 0.0
  %188 = vmatprep.subr.mxu0 0.0
  %189 = vmatpush2.msra.mxu0 0.0
  %190 = vmatprep.subr.mxu0 0.0
  %191 = vmatpush2.msra.mxu0 0.0
  %192 = vmatprep.subr.mxu0 0.0
  %193 = vmatpush2.msra.mxu0 0.0
  %194 = vmatprep.subr.mxu0 0.0
  %195 = vmatpush2.msra.mxu0 0.0
  %196 = vmatprep.subr.mxu0 0.0
  %197 = vmatpush2.msra.mxu0 0.0
  %198 = vmatprep.subr.mxu0 0.0
  %199 = vmatpush2.msra.mxu0 0.0
  %200 = vmatprep.subr.mxu0 0.0
  %201 = vmatpush2.msra.mxu0 0.0
  %202 = vmatprep.mubr.f32.mxu0 0.0
  %203 = vmatmul.mubr.f32.gmra.mxu0 %v136
  %v204 = vpop.f32.mrf.mxu0
  %v205 = vadd.f32 %v132, %v204
  %v206 = vpop.f32.mrf.mxu0
  %207 = vdwg.mxu0
  %v208 = vmax.f32 %v205, 0.0
  %v209 = vld [vmem:[%s5] sm:$0xff]
  %v210 = vld [vmem:[%s5 + $0x8] sm:$0xff]
  %v211 = vld [vmem:[%s5 + $0x10] sm:$0xff]
  %v212 = vld [vmem:[%s5 + $0x18] sm:$0xff]
  %v213 = vld [vmem:[%s6] sm:$0x1]
  %v215 = vlaneseq
  %v216 = vshrl.u32 %v215, 7
  %v217 = vsub.s32 0, %v216
  %v218 = vrot.slane %v213, %v217
  %v221 = vsel %vm44, %v208, 0
  %223 = vmatprep.subr.mxu0 0.0
  %224 = vmatpush1.msra.mxu0 0.0
  %225 = vmatprep.subr.mxu0 0.0
  %226 = vmatpush1.msra.mxu0 0.0
  %227 = vmatprep.subr.mxu0 0.0
  %228 = vmatpush1.msra.mxu0 0.0
  %229 = vmatprep.subr.mxu0 0.0
  %230 = vmatpush1.msra.mxu0 0.0
  %231 = vmatprep.subr.mxu0 0.0
  %232 = vmatpush1.msra.mxu0 0.0
  %233 = vmatprep.subr.mxu0 0.0
  %234 = vmatpush1.msra.mxu0 0.0
  %235 = vmatprep.subr.mxu0 0.0
  %236 = vmatpush1.msra.mxu0 0.0
  %237 = vmatprep.subr.mxu0 0.0
  %238 = vmatpush1.msra.mxu0 0.0
  %239 = vmatprep.subr.mxu0 0.0
  %240 = vmatpush1.msra.mxu0 0.0
  %241 = vmatprep.subr.mxu0 0.0
  %242 = vmatpush1.msra.mxu0 0.0
  %243 = vmatprep.subr.mxu0 0.0
  %244 = vmatpush1.msra.mxu0 0.0
  %245 = vmatprep.subr.mxu0 0.0
  %246 = vmatpush1.msra.mxu0 0.0
  %247 = vmatprep.subr.mxu0 0.0
  %248 = vmatpush1.msra.mxu0 %v212
  %249 = vmatprep.subr.mxu0 0.0
  %250 = vmatpush1.msra.mxu0 %v211
  %251 = vmatprep.subr.mxu0 0.0
  %252 = vmatpush1.msra.mxu0 %v210
  %253 = vmatprep.subr.mxu0 0.0
  %254 = vmatpush1.msra.mxu0 %v209
  %255 = vmatprep.subr.mxu0 0.0
  %256 = vmatpush2.msra.mxu0 0.0
  %257 = vmatprep.subr.mxu0 0.0
  %258 = vmatpush2.msra.mxu0 0.0
  %259 = vmatprep.subr.mxu0 0.0
  %260 = vmatpush2.msra.mxu0 0.0
  %261 = vmatprep.subr.mxu0 0.0
  %262 = vmatpush2.msra.mxu0 0.0
  %263 = vmatprep.subr.mxu0 0.0
  %264 = vmatpush2.msra.mxu0 0.0
  %265 = vmatprep.subr.mxu0 0.0
  %266 = vmatpush2.msra.mxu0 0.0
  %267 = vmatprep.subr.mxu0 0.0
  %268 = vmatpush2.msra.mxu0 0.0
  %269 = vmatprep.subr.mxu0 0.0
  %270 = vmatpush2.msra.mxu0 0.0
  %271 = vmatprep.subr.mxu0 0.0
  %272 = vmatpush2.msra.mxu0 0.0
  %273 = vmatprep.subr.mxu0 0.0
  %274 = vmatpush2.msra.mxu0 0.0
  %275 = vmatprep.subr.mxu0 0.0
  %276 = vmatpush2.msra.mxu0 0.0
  %277 = vmatprep.subr.mxu0 0.0
  %278 = vmatpush2.msra.mxu0 0.0
  %279 = vmatprep.subr.mxu0 0.0
  %280 = vmatpush2.msra.mxu0 0.0
  %281 = vmatprep.subr.mxu0 0.0
  %282 = vmatpush2.msra.mxu0 0.0
  %283 = vmatprep.subr.mxu0 0.0
  %284 = vmatpush2.msra.mxu0 0.0
  %285 = vmatprep.subr.mxu0 0.0
  %286 = vmatpush2.msra.mxu0 0.0
  %287 = vmatprep.mubr.f32.mxu0 0.0
  %288 = vmatmul.mubr.f32.gmra.mxu0 %v221
  %v289 = vpop.f32.mrf.mxu0
  %v290 = vadd.f32 %v218, %v289
  %v291 = vpop.f32.mrf.mxu0
  %292 = vdwg.mxu0
  %v293 = vmax.f32 %v290, 0.0
  %v294 = vld [vmem:[%s7] sm:$0x3]
  %v295 = vld [vmem:[%s8] sm:$0x3]
  %297 = vset.pattern.permute.xlu0 0
  %298 = vperm.xlu0 %297, %v295
  %v299 = vpop.permute.xlu0 %298
  %vm301 = vcmask 130048
  %v303 = vsel %vm301, %v294, 0
  %v306 = vsel %vm301, %v293, 0
  %308 = vmatprep.subr.mxu0 0.0
  %309 = vmatpush1.xpose.msra.mxu0 0.0
  %310 = vmatprep.subr.mxu0 0.0
  %311 = vmatpush1.xpose.msra.mxu0 0.0
  %312 = vmatprep.subr.mxu0 0.0
  %313 = vmatpush1.xpose.msra.mxu0 0.0
  %314 = vmatprep.subr.mxu0 0.0
  %315 = vmatpush1.xpose.msra.mxu0 0.0
  %316 = vmatprep.subr.mxu0 0.0
  %317 = vmatpush1.xpose.msra.mxu0 0.0
  %318 = vmatprep.subr.mxu0 0.0
  %319 = vmatpush1.xpose.msra.mxu0 0.0
  %320 = vmatprep.subr.mxu0 0.0
  %321 = vmatpush1.xpose.msra.mxu0 0.0
  %322 = vmatprep.subr.mxu0 0.0
  %323 = vmatpush1.xpose.msra.mxu0 0.0
  %324 = vmatprep.subr.mxu0 0.0
  %325 = vmatpush1.xpose.msra.mxu0 0.0
  %326 = vmatprep.subr.mxu0 0.0
  %327 = vmatpush1.xpose.msra.mxu0 0.0
  %328 = vmatprep.subr.mxu0 0.0
  %329 = vmatpush1.xpose.msra.mxu0 0.0
  %330 = vmatprep.subr.mxu0 0.0
  %331 = vmatpush1.xpose.msra.mxu0 0.0
  %332 = vmatprep.subr.mxu0 0.0
  %333 = vmatpush1.xpose.msra.mxu0 0.0
  %334 = vmatprep.subr.mxu0 0.0
  %335 = vmatpush1.xpose.msra.mxu0 0.0
  %336 = vmatprep.subr.mxu0 0.0
  %337 = vmatpush1.xpose.msra.mxu0 0.0
  %338 = vmatprep.subr.mxu0 0.0
  %339 = vmatpush1.xpose.msra.mxu0 %v306
  %340 = vmatprep.subr.mxu0 0.0
  %341 = vmatpush2.xpose.msra.mxu0 0.0
  %342 = vmatprep.subr.mxu0 0.0
  %343 = vmatpush2.xpose.msra.mxu0 0.0
  %344 = vmatprep.subr.mxu0 0.0
  %345 = vmatpush2.xpose.msra.mxu0 0.0
  %346 = vmatprep.subr.mxu0 0.0
  %347 = vmatpush2.xpose.msra.mxu0 0.0
  %348 = vmatprep.subr.mxu0 0.0
  %349 = vmatpush2.xpose.msra.mxu0 0.0
  %350 = vmatprep.subr.mxu0 0.0
  %351 = vmatpush2.xpose.msra.mxu0 0.0
  %352 = vmatprep.subr.mxu0 0.0
  %353 = vmatpush2.xpose.msra.mxu0 0.0
  %354 = vmatprep.subr.mxu0 0.0
  %355 = vmatpush2.xpose.msra.mxu0 0.0
  %356 = vmatprep.subr.mxu0 0.0
  %357 = vmatpush2.xpose.msra.mxu0 0.0
  %358 = vmatprep.subr.mxu0 0.0
  %359 = vmatpush2.xpose.msra.mxu0 0.0
  %360 = vmatprep.subr.mxu0 0.0
  %361 = vmatpush2.xpose.msra.mxu0 0.0
  %362 = vmatprep.subr.mxu0 0.0
  %363 = vmatpush2.xpose.msra.mxu0 0.0
  %364 = vmatprep.subr.mxu0 0.0
  %365 = vmatpush2.xpose.msra.mxu0 0.0
  %366 = vmatprep.subr.mxu0 0.0
  %367 = vmatpush2.xpose.msra.mxu0 0.0
  %368 = vmatprep.subr.mxu0 0.0
  %369 = vmatpush2.xpose.msra.mxu0 0.0
  %370 = vmatprep.subr.mxu0 0.0
  %371 = vmatpush2.xpose.msra.mxu0 0.0
  %372 = vmatprep.mubr.f32.mxu0 0.0
  %373 = vmatmul.mubr.f32.gmra.mxu0 %v303
  %v374 = vpop.f32.mrf.mxu0
  %v375 = vadd.f32 %v299, %v374
  %v376 = vpop.f32.mrf.mxu0
  %377 = vdwg.mxu0
  %vm378 = vcmask 9216
  %379 = vst.msk [vmem:[%s9] sm:$0x3] %vm378, %v375
  // Predicated region
  $region38: #{_classifier_forward_impl.1} parent=0 // pred_check
    _
  $region39: #{_classifier_forward_impl.1} parent=0 // pred_check_branch
    %381 = sbr.rel (0) target = $region41
  $region40: #{_classifier_forward_impl.1} parent=0 // pred_region
    _
  $region41: #{_classifier_forward_impl.1} parent=0 // pred_fallthru
    _
  // Predicated region
  $region42: #{_classifier_forward_impl.1} parent=0 // pred_check
    _
  $region43: #{_classifier_forward_impl.1} parent=0 // pred_check_branch
    %383 = sbr.rel (0) target = $region45
  $region44: #{_classifier_forward_impl.1} parent=0 // pred_region
    _
  $region45: #{_classifier_forward_impl.1} parent=0 // pred_fallthru
    _

</llo_original>
